<compile_context>
chip_gen: v6e
topology: v6e:2x2x1
jax: 0.10.0
libtpu: 0.0.40
codegen_flags: <defaults>
</compile_context>

<pallas_src>
import math

import jax
import jax.numpy as jnp
from jax import lax
from jax.experimental import pallas as pl
from jax.experimental.pallas import tpu as pltpu

_LANE = 128
_VMEM_LIMIT = 40 * 1024 * 1024        # explicit scoped-VMEM cap (safe under v7x's 64 MiB)
_VMEM_BUDGET = 32 * 1024 * 1024       # budget used when choosing the time block


# ----------------------------- layer-0 x-projection (encoder folded in) -----------------------------
def _xproj_kernel(x_ref, w_ref, b_ref, o_ref):
    acc = jnp.dot(x_ref[...].astype(w_ref.dtype), w_ref[...],
                  preferred_element_type=jnp.float32)
    o_ref[...] = (acc + b_ref[...]).astype(o_ref.dtype)


def xproj(x, w, b, row_tile=512):
    rows, d_in = x.shape
    wdt = w.shape[1]
    rt = rows if rows <= row_tile else row_tile
    if rows % rt != 0:
        rt = rows                      # TODO(synk): masked last row-tile for odd row counts
    return pl.pallas_call(
        _xproj_kernel,
        out_shape=jax.ShapeDtypeStruct((rows, wdt), jnp.bfloat16),
        grid_spec=pltpu.PrefetchScalarGridSpec(
            num_scalar_prefetch=0,
            grid=(rows // rt,),
            in_specs=[pl.BlockSpec((rt, d_in), lambda i: (i, 0)),
                      pl.BlockSpec(w.shape, lambda i: (0, 0)),
                      pl.BlockSpec(b.shape, lambda i: (0, 0))],
            out_specs=pl.BlockSpec((rt, wdt), lambda i: (i, 0))),
        compiler_params=pltpu.CompilerParams(
            dimension_semantics=("parallel",),
            vmem_limit_bytes=_VMEM_LIMIT),
    )(x, w, b)


# ----------------------------- RIMs (BlocksCore) recurrent layer -----------------------------
def _make_rims_kernel(TB, Bs, pc, w_next):
    nh_p, nb, bs_p, dk_p = pc["nh_p"], pc["nb"], pc["bs_p"], pc["dk_p"]
    nh_c, dk_c, topk = pc["nh_c"], pc["dk_c"], pc["topk"]
    q_w = nb * dk_p                    # wq_i width inside fused Wh1
    qk_w = nb * nh_c * dk_c            # wq_c / wk_c width inside fused Whc
    cw = 4 * bs_p                      # a_n scaling chunk width (blockify column chunk)
    inv_sqrt_dki = 1.0 / math.sqrt(pc["dk_inp"])
    inv_sqrt_dkc = 1.0 / math.sqrt(dk_c)
    keep_thresh = float(nb - topk)

    def kernel(slab_ref, h0_ref, c0_ref, wh1_ref, bg_ref, whc_ref, bo_ref,
               wn_ref, bn_ref, out_ref, hT_ref, cT_ref,
               hseq_scr, hx_scr, cx_scr):
        s = pl.program_id(1)           # time-block index (batch-shard index is axis 0)

        @pl.when(s == 0)               # re-init state whenever a new batch shard starts
        def _():
            hx_scr[...] = h0_ref[...]
            cx_scr[...] = c0_ref[...]

        # ---- loop-invariant constants hoisted (JAX does not CSE broadcast_in_dim) ----
        bg_b = jnp.broadcast_to(bg_ref[...], (Bs, 4 * nh_p))
        bo_b = jnp.broadcast_to(bo_ref[...], (Bs, nh_p))
        # 0/1 replication matrices: per-block scalar -> per-hidden / per-gate lanes (MXU expand)
        rep_h = (lax.broadcasted_iota(jnp.int32, (nb, nh_p), 1) // bs_p ==
                 lax.broadcasted_iota(jnp.int32, (nb, nh_p), 0)).astype(jnp.bfloat16)
        rep_g = (lax.broadcasted_iota(jnp.int32, (nb, 4 * nh_p), 1) // cw ==
                 lax.broadcasted_iota(jnp.int32, (nb, 4 * nh_p), 0)).astype(jnp.bfloat16)
        ii = lax.broadcasted_iota(jnp.int32, (Bs, nb, nb), 1)
        jj = lax.broadcasted_iota(jnp.int32, (Bs, nb, nb), 2)
        upper_tri = jj > ii            # ties credited to the earlier block index

        def step(t, carry):
            hx, cx = carry
            row = slab_ref[t]                          # (Bs, dk_p + 4nh_p) bf16
            xk = row[:, :dk_p].astype(jnp.float32)     # hoisted x @ wk_i  (128-aligned split)
            xg = row[:, dk_p:].astype(jnp.float32)     # hoisted (x @ wv_i) @ W_ih_compact

            # ---- fused recurrent matmul: hx @ [wq_i | w_hh]  (bf16 MXU, f32 acc) ----
            hq = jnp.dot(hx.astype(jnp.bfloat16), wh1_ref[...],
                         preferred_element_type=jnp.float32)
            q_all = hq[:, :q_w]
            gates_h = hq[:, q_w:]

            # ---- input attention (null slot has zero key/value => 2-way softmax == sigmoid) ----
            scores = (q_all.reshape(Bs, nb, dk_p) * xk[:, None, :]).sum(-1) * inv_sqrt_dki
            a = jax.nn.sigmoid(scores)                 # (Bs, nb) weight on the input slot

            # ---- top-k: keep the topk blocks with smallest attention-to-null ----
            a0 = 1.0 - a
            gt = a0[:, None, :] > a0[:, :, None]
            tie = (a0[:, None, :] == a0[:, :, None]) & upper_tri
            beaten = (gt | tie).astype(jnp.float32).sum(-1)
            mask_blk = (beaten >= keep_thresh).astype(jnp.bfloat16)     # exact 0/1
            mask = jnp.dot(mask_blk, rep_h, preferred_element_type=jnp.float32)

            # ---- block LSTM cell (x-side matmul hoisted; a_n replication on MXU) ----
            # note: `a` is bf16-rounded only for the lane replication; gate math stays f32
            a_g = jnp.dot(a.astype(jnp.bfloat16), rep_g,
                          preferred_element_type=jnp.float32)
            gates = a_g * xg + gates_h + bg_b
            i_g = jax.nn.sigmoid(gates[:, 0 * nh_p:1 * nh_p])
            f_g = jax.nn.sigmoid(gates[:, 1 * nh_p:2 * nh_p])
            g_g = jnp.tanh(gates[:, 2 * nh_p:3 * nh_p])
            o_g = jax.nn.sigmoid(gates[:, 3 * nh_p:4 * nh_p])
            cx_new = f_g * cx + i_g * g_g
            hx_new = o_g * jnp.tanh(cx_new)

            # ---- communication attention among blocks (output proj folded into V);
            #      heads stacked on the batch axis -> ONE einsum pair + one softmax ----
            qkv = jnp.dot(hx_new.astype(jnp.bfloat16), whc_ref[...],
                          preferred_element_type=jnp.float32)
            q3 = qkv[:, :qk_w].reshape(Bs, nb, nh_c * dk_c)
            k3 = qkv[:, qk_w:2 * qk_w].reshape(Bs, nb, nh_c * dk_c)
            v3 = qkv[:, 2 * qk_w:].reshape(Bs, nb, nh_c * bs_p)
            qs = jnp.concatenate([q3[:, :, h * dk_c:(h + 1) * dk_c] for h in range(nh_c)], axis=0)
            ks = jnp.concatenate([k3[:, :, h * dk_c:(h + 1) * dk_c] for h in range(nh_c)], axis=0)
            vs = jnp.concatenate([v3[:, :, h * bs_p:(h + 1) * bs_p] for h in range(nh_c)], axis=0)
            sc = jnp.einsum('zid,zjd->zij', qs, ks,
                            preferred_element_type=jnp.float32) * inv_sqrt_dkc
            sc = sc - jnp.max(sc, axis=-1, keepdims=True)
            p = jnp.exp(sc)
            p = p * pl.reciprocal(jnp.sum(p, axis=-1, keepdims=True), approx=True)
            att_all = jnp.einsum('zij,zjd->zid', p, vs,
                                 preferred_element_type=jnp.float32)    # (nh_c*Bs, nb, bs_p)
            att = att_all[:Bs]
            for h in range(1, nh_c):
                att = att + att_all[h * Bs:(h + 1) * Bs]
            hx_new = hx_new + att.reshape(Bs, nh_p) + bo_b

            # ---- gate: inactive blocks keep their previous state ----
            hx = mask * hx_new + (1.0 - mask) * hx
            cx = mask * cx_new + (1.0 - mask) * cx
            hseq_scr[t] = hx
            return hx, cx

        carry = (hx_scr[...], cx_scr[...])
        if TB <= 8:                            # short block: full static unroll
            for t in range(TB):
                carry = step(t, carry)
        else:                                  # larger blocks: bound vreg live ranges
            carry = lax.fori_loop(0, TB, step, carry)
        hx, cx = carry
        hx_scr[...] = hx
        cx_scr[...] = cx

        # ---- fused epilogue: next layer's x-projection (or the decoder) on the VMEM-
        #      resident hidden block -> no (T,B,nh) f32 HBM round trip per layer ----
        h_mat = hseq_scr[...].reshape(TB * Bs, nh_p).astype(jnp.bfloat16)
        nxt = jnp.dot(h_mat, wn_ref[...], preferred_element_type=jnp.float32) + bn_ref[...]
        out_ref[...] = nxt.reshape(TB, Bs, w_next).astype(out_ref.dtype)

        @pl.when(s == pl.num_programs(1) - 1)   # predicate on the time axis only
        def _():
            hT_ref[...] = hx
            cT_ref[...] = cx

    return kernel


def rims_layer_forward(slab, h0p, c0p, fl, pc, TB, b_shards):
    T, B, w_in = slab.shape
    nh_p = pc["nh_p"]
    Bs = B // b_shards
    n_t = T // TB
    w_next = fl["Wnext"].shape[1]
    out_dtype = jnp.float32 if fl["out_is_last"] else jnp.bfloat16
    kernel = _make_rims_kernel(TB, Bs, pc, w_next)

    in_specs = [
        pl.BlockSpec((TB, Bs, w_in), lambda b, s: (s, b, 0)),
        pl.BlockSpec((Bs, nh_p), lambda b, s: (b, 0)),
        pl.BlockSpec((Bs, nh_p), lambda b, s: (b, 0)),
        pl.BlockSpec(fl["Wh1"].shape, lambda b, s: (0, 0)),
        pl.BlockSpec(fl["bg"].shape, lambda b, s: (0, 0)),
        pl.BlockSpec(fl["Whc"].shape, lambda b, s: (0, 0)),
        pl.BlockSpec(fl["bo"].shape, lambda b, s: (0, 0)),
        pl.BlockSpec(fl["Wnext"].shape, lambda b, s: (0, 0)),
        pl.BlockSpec(fl["bnext"].shape, lambda b, s: (0, 0)),
    ]
    out_specs = (
        pl.BlockSpec((TB, Bs, w_next), lambda b, s: (s, b, 0)),
        pl.BlockSpec((Bs, nh_p), lambda b, s: (b, 0)),
        pl.BlockSpec((Bs, nh_p), lambda b, s: (b, 0)),
    )
    out_shape = (
        jax.ShapeDtypeStruct((T, B, w_next), out_dtype),
        jax.ShapeDtypeStruct((B, nh_p), jnp.float32),
        jax.ShapeDtypeStruct((B, nh_p), jnp.float32),
    )
    return pl.pallas_call(
        kernel,
        out_shape=out_shape,
        grid_spec=pltpu.PrefetchScalarGridSpec(
            num_scalar_prefetch=0,
            grid=(b_shards, n_t),
            in_specs=in_specs,
            out_specs=out_specs,
            scratch_shapes=[pltpu.VMEM((TB, Bs, nh_p), jnp.float32),
                            pltpu.VMEM((Bs, nh_p), jnp.float32),
                            pltpu.VMEM((Bs, nh_p), jnp.float32)]),
        compiler_params=pltpu.CompilerParams(
            dimension_semantics=("parallel", "arbitrary"),
            vmem_limit_bytes=_VMEM_LIMIT),
    )(slab, h0p, c0p, fl["Wh1"], fl["bg"], fl["Whc"], fl["bo"],
      fl["Wnext"], fl["bnext"])


# ----------------------------- parameter construction (plain JAX glue) -----------------------------
def _block_diag(blocks):
    k = len(blocks)
    r, c = blocks[0].shape
    out = jnp.zeros((k * r, k * c), dtype=jnp.float32)
    for i, blk in enumerate(blocks):
        out = out.at[i * r:(i + 1) * r, i * c:(i + 1) * c].set(blk)
    return out


def _blockify(w, k):
    # exact emulation of zero_matrix_elements used by BlockLSTM.blockify_params
    r, c = w.shape
    g1, g2 = r // k, c // k
    m = jnp.zeros_like(w)
    for b in range(k):
        m = m.at[b * g1:(b + 1) * g1, b * g2:(b + 1) * g2].set(1.0)
    return w * m


def _pad_group_cols(w, n_groups, per, per_p):
    r = w.shape[0]
    w3 = w.reshape(r, n_groups, per)
    w3 = jnp.pad(w3, ((0, 0), (0, 0), (0, per_p - per)))
    return w3.reshape(r, n_groups * per_p)


def _pad_group_rows(w, n_groups, per, per_p):
    c = w.shape[1]
    w3 = w.reshape(n_groups, per, c)
    w3 = jnp.pad(w3, ((0, 0), (0, per_p - per), (0, 0)))
    return w3.reshape(n_groups * per_p, c)


def init_params(key, *, input_dim, output_dim, ninp, nhid, num_blocks, topk,
                dk_inp=64, nh_c=4, dk_c=32, dv_c=32):
    keys = iter(jax.random.split(key, 256))
    nxt = lambda: next(keys)
    u = lambda shape, bound: jax.random.uniform(nxt(), shape, jnp.float32, -bound, bound)
    gl = lambda shape: 0.01 * jax.random.normal(nxt(), shape, jnp.float32)

    params = {
        "enc_w": u((input_dim, ninp), 0.1),
        "enc_b": u((1, ninp), 1.0 / math.sqrt(input_dim)),
        "dec_w": u((nhid[-1], output_dim), 0.1),
        "dec_b": jnp.zeros((1, output_dim), jnp.float32),
        "layers": [], "cfgs": [],
    }

    d_in = ninp
    for l in range(len(nhid)):
        nh, nb = nhid[l], num_blocks[l]
        bs = nh // nb
        att_out = 4 * bs
        lstm_in = nb * att_out
        std = 1.0 / math.sqrt(nh)
        lp = {
            "wq_i": _block_diag([gl((bs, dk_inp)) for _ in range(nb)]),
            "wk_i": gl((d_in, dk_inp)),
            "wv_i": gl((d_in, att_out)),
            "w_ih": _blockify(u((4 * nh, lstm_in), std), nb).T,
            "w_hh": _blockify(u((4 * nh, nh), std), nb).T,
            "b": (u((1, 4 * nh), std) + u((1, 4 * nh), std)),
            "wq_c": _block_diag([gl((bs, nh_c * dk_c)) for _ in range(nb)]),
            "wk_c": _block_diag([gl((bs, nh_c * dk_c)) for _ in range(nb)]),
            "wv_c": _block_diag([gl((bs, nh_c * dv_c)) for _ in range(nb)]),
            "wo_c": u((nh_c * dv_c, bs), 1.0 / math.sqrt(nh_c * dv_c)),
            "bo_c": jnp.zeros((1, bs), jnp.float32),
        }
        params["layers"].append(lp)
        params["cfgs"].append(dict(nhid=nh, nb=nb, topk=topk[l],
                                   dk_inp=dk_inp, nh_c=nh_c, dk_c=dk_c, dv_c=dv_c))
        d_in = nh
    return params


def fuse_params(params):
    """One-time weight prep: hoist / fold / fuse weights, lane-pad the hidden and key dims
    to multiples of 128 (padded dims stay exactly zero), cast matmul operands to bf16."""
    nlayers = len(params["layers"])

    pcfgs = []
    for cfg in params["cfgs"]:
        nh, nb = cfg["nhid"], cfg["nb"]
        bs = nh // nb
        step = _LANE // math.gcd(_LANE, nb)
        bs_p = ((bs + step - 1) // step) * step
        dk_p = ((cfg["dk_inp"] + _LANE - 1) // _LANE) * _LANE
        pcfgs.append(dict(cfg, bs=bs, bs_p=bs_p, nh_p=nb * bs_p, dk_p=dk_p))

    # ---- pass 1: padded x-side projections per layer (encoder folded into layer 0) ----
    Wx_list, bx_list = [], []
    for l, (lp, cfg, pc) in enumerate(zip(params["layers"], params["cfgs"], pcfgs)):
        nh, nb = cfg["nhid"], cfg["nb"]
        bs, bs_p, dk_p = pc["bs"], pc["bs_p"], pc["dk_p"]
        att_out = 4 * bs
        w_ih = lp["w_ih"]                                            # (nb*att_out, 4nh)
        w_compact = sum(w_ih[n * att_out:(n + 1) * att_out, :] for n in range(nb))
        w_xg = lp["wv_i"] @ w_compact                                # (d_in, 4nh)
        wk_pad = jnp.pad(lp["wk_i"], ((0, 0), (0, dk_p - cfg["dk_inp"])))
        wxg_pad = _pad_group_cols(w_xg, 4 * nb, bs, bs_p)            # gate-column padding
        wx = jnp.concatenate([wk_pad, wxg_pad], axis=1)              # (d_in, dk_p + 4nh_p)
        if l == 0:
            wx_full = params["enc_w"] @ wx
            bx = params["enc_b"] @ wx
        else:
            prev = pcfgs[l - 1]
            wx_full = _pad_group_rows(wx, params["cfgs"][l - 1]["nb"], prev["bs"], prev["bs_p"])
            bx = jnp.zeros((1, wx.shape[1]), jnp.float32)
        Wx_list.append(wx_full.astype(jnp.bfloat16))
        bx_list.append(bx)

    # ---- pass 2: recurrent-side fusion + padding ----
    fused = {"layers": [], "cfgs": pcfgs, "out_dim": params["dec_w"].shape[1]}
    for l, (lp, cfg, pc) in enumerate(zip(params["layers"], params["cfgs"], pcfgs)):
        nh, nb = cfg["nhid"], cfg["nb"]
        nh_c, dk_c, dv_c = cfg["nh_c"], cfg["dk_c"], cfg["dv_c"]
        bs, bs_p, nh_p, dk_p = pc["bs"], pc["bs_p"], pc["nh_p"], pc["dk_p"]

        wq_i = _pad_group_cols(lp["wq_i"], nb, cfg["dk_inp"], dk_p)
        w_hh = _pad_group_cols(lp["w_hh"], 4 * nb, bs, bs_p)
        wh1 = _pad_group_rows(jnp.concatenate([wq_i, w_hh], axis=1), nb, bs, bs_p)
        bg = _pad_group_cols(lp["b"], 4 * nb, bs, bs_p)

        wo_bd = _block_diag([lp["wo_c"][h * dv_c:(h + 1) * dv_c, :] for h in range(nh_c)])
        wv_fold = lp["wv_c"] @ jnp.kron(jnp.eye(nb, dtype=jnp.float32), wo_bd)   # (nh, nb*nh_c*bs)
        wv_fold = _pad_group_cols(wv_fold, nb * nh_c, bs, bs_p)
        whc = _pad_group_rows(jnp.concatenate([lp["wq_c"], lp["wk_c"], wv_fold], axis=1),
                              nb, bs, bs_p)
        bo = _pad_group_cols(jnp.tile(lp["bo_c"], (1, nb)), nb, bs, bs_p)

        if l + 1 < nlayers:                       # fuse next layer's x-projection
            wnext, bnext = Wx_list[l + 1], bx_list[l + 1]
        else:                                     # fuse the decoder (lane-padded to 128)
            out_dim = params["dec_w"].shape[1]
            out_pad = ((out_dim + _LANE - 1) // _LANE) * _LANE
            dw = _pad_group_rows(params["dec_w"], nb, bs, bs_p)
            dw = jnp.pad(dw, ((0, 0), (0, out_pad - out_dim)))
            wnext = dw.astype(jnp.bfloat16)
            bnext = jnp.pad(params["dec_b"], ((0, 0), (0, out_pad - out_dim)))

        fused["layers"].append(dict(
            Wx=Wx_list[l], bx=bx_list[l],
            Wh1=wh1.astype(jnp.bfloat16), bg=bg,
            Whc=whc.astype(jnp.bfloat16), bo=bo,
            Wnext=wnext, bnext=bnext,
            out_is_last=(l + 1 == nlayers)))
    return fused


# ----------------------------- state padding helpers & time-block budgeting -----------------------------
def _pad_state(h, nb, bs, bs_p):
    return _pad_group_cols(h, nb, bs, bs_p)


def _unpad_state(hp, nb, bs, bs_p):
    bsz = hp.shape[0]
    return hp.reshape(bsz, nb, bs_p)[:, :, :bs].reshape(bsz, nb * bs)


def _choose_time_block(T, Bs, w_in, w_out, nh_p):
    def est(tb):
        io = 2 * tb * Bs * w_in * 2 + 2 * tb * Bs * w_out * 4     # double-buffered blocks
        scr = tb * Bs * nh_p * 4 + 2 * Bs * nh_p * 4
        return io + scr + (8 << 20)                               # weights + headroom
    best = 1
    for tb in range(1, min(T, 128) + 1):
        if T % tb == 0 and est(tb) <= _VMEM_BUDGET:
            best = tb
    return best


# ----------------------------- full RNNModel.forward -----------------------------
def rnn_model_forward(fused, x, hidden):
    T, B, _ = x.shape
    out_dim = fused["out_dim"]
    fl0 = fused["layers"][0]

    # layer-0 x-side projection (encoder Linear folded in); later layers' projections and
    # the decoder are fused into the recurrent kernels' epilogues.
    slab = xproj(x.reshape(T * B, -1), fl0["Wx"], fl0["bx"])
    slab = slab.reshape(T, B, fl0["Wx"].shape[1])

    # batch-shard "parallel" axis (2 TensorCores on v7x); keep shards sublane/bf16-tile full
    b_shards = 2 if B % 32 == 0 else 1

    new_hidden = []
    for l, (fl, pc) in enumerate(zip(fused["layers"], fused["cfgs"])):
        nb, bs, bs_p = pc["nb"], pc["bs"], pc["bs_p"]
        h0, c0 = hidden[l]
        h0p = _pad_state(h0, nb, bs, bs_p)
        c0p = _pad_state(c0, nb, bs, bs_p)
        TB = _choose_time_block(T, B // b_shards, slab.shape[2],
                                fl["Wnext"].shape[1], pc["nh_p"])
        out, hTp, cTp = rims_layer_forward(slab, h0p, c0p, fl, pc, TB, b_shards)
        new_hidden.append((_unpad_state(hTp, nb, bs, bs_p),
                           _unpad_state(cTp, nb, bs, bs_p)))
        slab = out                     # next layer's bf16 slab, or the decoder output

    dec = slab[:, :, :out_dim]         # strip decoder lane padding
    return dec, new_hidden, 0.0, None, None


def init_hidden(bsz, nhid):
    return [(jnp.zeros((bsz, h), jnp.float32), jnp.zeros((bsz, h), jnp.float32)) for h in nhid]


if __name__ == "__main__":
    # Small config consistent with the adding-task model:
    # rnn_type='LSTM', input_dim=2, output_dim=1, ninp=64, nhid=[64,64],
    # nlayers=2, num_blocks=[4,4], topk=[2,2], do_gru=False
    T, B = 8, 8
    input_dim, output_dim, ninp = 2, 1, 64
    nhid, num_blocks, topk = [64, 64], [4, 4], [2, 2]

    key = jax.random.PRNGKey(0)
    pkey, xkey = jax.random.split(key)
    params = init_params(pkey, input_dim=input_dim, output_dim=output_dim,
                         ninp=ninp, nhid=nhid, num_blocks=num_blocks, topk=topk)
    fused = fuse_params(params)        # one-time prep (analogue of blockify_params)

    x = jax.random.normal(xkey, (T, B, input_dim), jnp.float32)   # (seq, batch, feature)
    hidden = init_hidden(B, nhid)

    dec, new_hidden, extra_loss, _, _ = rnn_model_forward(fused, x, hidden)
    dec = jax.block_until_ready(dec)
    for h, c in new_hidden:
        jax.block_until_ready(h)
        jax.block_until_ready(c)

    assert dec.shape == (T, B, output_dim)
    assert bool(jnp.all(jnp.isfinite(dec)))
    for h, c in new_hidden:
        assert h.shape == (B, nhid[0]) and c.shape == (B, nhid[0])
        assert bool(jnp.all(jnp.isfinite(h))) and bool(jnp.all(jnp.isfinite(c)))
    print("KERNEL_OK")
</pallas_src>

<mosaic_0001>
module attributes {stable_mosaic.version = 11 : i64} {
  func.func @_xproj_kernel(%arg0: i32, %arg1: memref<64x2xf32, #tpu.memory_space<vmem>>, %arg2: memref<2x640xbf16, #tpu.memory_space<vmem>>, %arg3: memref<1x640xf32, #tpu.memory_space<vmem>>, %arg4: memref<64x640xbf16, #tpu.memory_space<vmem>>) attributes {dimension_semantics = [#tpu.dimension_semantics<parallel>], iteration_bounds = array<i64: 1>, scalar_prefetch = 0 : i64, scratch_operands = 0 : i64, tpu.core_type = #tpu.core_type<tc>, window_params = [{transform_indices = @transform_0, window_bounds = array<i64: 64, 2>}, {pipeline_mode = #tpu.pipeline_mode<synchronous>, transform_indices = @transform_1, window_bounds = array<i64: 2, 640>}, {pipeline_mode = #tpu.pipeline_mode<synchronous>, transform_indices = @transform_2, window_bounds = array<i64: 1, 640>}, {transform_indices = @transform_3, window_bounds = array<i64: 64, 640>}]} {
    %c0 = arith.constant 0 : index
    %c0_0 = arith.constant 0 : index
    %0 = vector.load %arg1[%c0, %c0_0] : memref<64x2xf32, #tpu.memory_space<vmem>>, vector<64x2xf32>
    %1 = arith.truncf %0 : vector<64x2xf32> to vector<64x2xbf16>
    %c0_1 = arith.constant 0 : index
    %c0_2 = arith.constant 0 : index
    %2 = vector.load %arg2[%c0_1, %c0_2] : memref<2x640xbf16, #tpu.memory_space<vmem>>, vector<2x640xbf16>
    %cst = arith.constant dense<0.000000e+00> : vector<64x640xf32>
    %3 = tpu.matmul %1, %2, %cst {dimension_numbers = #tpu.dot_dimension_numbers<[1], [0], [0], [1], [0, 0, 1, 1], [], []>} : vector<64x2xbf16>, vector<2x640xbf16>, vector<64x640xf32> -> vector<64x640xf32>
    %c0_3 = arith.constant 0 : index
    %c0_4 = arith.constant 0 : index
    %4 = vector.load %arg3[%c0_3, %c0_4] : memref<1x640xf32, #tpu.memory_space<vmem>>, vector<1x640xf32>
    %5 = vector.broadcast %4 : vector<1x640xf32> to vector<64x640xf32>
    %6 = arith.addf %3, %5 : vector<64x640xf32>
    %7 = arith.truncf %6 : vector<64x640xf32> to vector<64x640xbf16>
    %c0_5 = arith.constant 0 : index
    %c0_6 = arith.constant 0 : index
    %8 = vector.load %arg4[%c0_5, %c0_6] : memref<64x640xbf16, #tpu.memory_space<vmem>>, vector<64x640xbf16>
    tpu.vector_store %arg4[%c0_5, %c0_6], %7 {strides = array<i32>} : memref<64x640xbf16, #tpu.memory_space<vmem>>, vector<64x640xbf16>,
    return
  }
  func.func @transform_0(%arg0: i32) -> (i32, i32) {
    %c0_i32 = arith.constant 0 : i32
    %c0_i32_0 = arith.constant 0 : i32
    return %arg0, %c0_i32 : i32, i32
  }
  func.func @transform_1(%arg0: i32) -> (i32, i32) {
    %c0_i32 = arith.constant 0 : i32
    %c0_i32_0 = arith.constant 0 : i32
    %c0_i32_1 = arith.constant 0 : i32
    return %c0_i32, %c0_i32_0 : i32, i32
  }
  func.func @transform_2(%arg0: i32) -> (i32, i32) {
    %c0_i32 = arith.constant 0 : i32
    %c0_i32_0 = arith.constant 0 : i32
    %c0_i32_1 = arith.constant 0 : i32
    return %c0_i32, %c0_i32_0 : i32, i32
  }
  func.func @transform_3(%arg0: i32) -> (i32, i32) {
    %c0_i32 = arith.constant 0 : i32
    %c0_i32_0 = arith.constant 0 : i32
    return %arg0, %c0_i32 : i32, i32
  }
}

</mosaic_0001>

<llo_original>
// kernel: tpu_custom_call.1
$region0: #{tpu_custom_call.1}
  #allocation0 [shape = 'u32[]', space=smem, size = 0x4, offset = 0x4, fixed_abs, tag = 'smem constant byte address 0x4 - core index']
  #allocation1 [shape = 'u32[144,128]{1,0:T(1,128)}', space=vmem, size = 0x12000, scoped, tag = 'internal scratch']
  %s0 = inlined_call_operand.vmem [shape: f32[64,2], index: 0, kind: input, shape index: {}]
  %s1 = inlined_call_operand.vmem [shape: bf16[2,640], index: 1, kind: input, shape index: {}]
  %s2 = inlined_call_operand.vmem [shape: f32[1,640], index: 2, kind: input, shape index: {}]
  %s3 = inlined_call_operand.hbm [shape: bf16[64,640], index: 3, kind: output, shape index: {}]
  %s4 = sld [smem:[#allocation0]]
  $region22: #{tpu_custom_call.1} parent=0
    _
  %s6 = ssub.s32 1, %s4
  %s7 = scalar_select 0, %s6, %s4
  $region1: #{tpu_custom_call.1} parent=0
    #allocation2 [shape = 'u8[81920]{0}', space=vmem, size = 0x14000, scoped, tag = 'output window, operand 0, single buffered']
    #allocation3 [shape = 's32[1]{0}', space=sflag, size = 0x4, scoped, tag = 'scoped memory for tpu_custom_call.1']
    %8 = vsyncpa [#allocation3], 0
    // Predicated region
    $region2: #{tpu_custom_call.1} parent=1 // pred_check
      _
    $region3: #{tpu_custom_call.1} parent=1 // pred_check_branch
      %10 = sbr.rel (0) target = $region5
    $region4: #{tpu_custom_call.1} parent=1 // pred_region
      _
    $region5: #{tpu_custom_call.1} parent=1 // pred_fallthru
      _
    // Predicated region
    $region6: #{tpu_custom_call.1} parent=1 // pred_check
      _
    $region7: #{tpu_custom_call.1} parent=1 // pred_check_branch
      %12 = sbr.rel (0) target = $region9
    $region8: #{tpu_custom_call.1} parent=1 // pred_region
      _
    $region9: #{tpu_custom_call.1} parent=1 // pred_fallthru
      _
    // Predicated region
    $region10: #{tpu_custom_call.1} parent=1 // pred_check
      _
    $region11: #{tpu_custom_call.1} parent=1 // pred_check_branch
      %14 = sbr.rel (0) target = $region13
    $region12: #{tpu_custom_call.1} parent=1 // pred_region
      _
    $region13: #{tpu_custom_call.1} parent=1 // pred_fallthru
      _
    %v16 = vld [vmem:[%s0] sm:$0xff]
    %v17 = vld [vmem:[%s0 + $0x8] sm:$0xff]
    %v18 = vld [vmem:[%s0 + $0x10] sm:$0xff]
    %v19 = vld [vmem:[%s0 + $0x18] sm:$0xff]
    %v20 = vld [vmem:[%s0 + $0x20] sm:$0xff]
    %v21 = vld [vmem:[%s0 + $0x28] sm:$0xff]
    %v22 = vld [vmem:[%s0 + $0x30] sm:$0xff]
    %v23 = vld [vmem:[%s0 + $0x38] sm:$0xff]
    %v24 = vpack.c.bf16 %v17, %v16
    %v25 = vpack.c.bf16 %v19, %v18
    %v26 = vpack.c.bf16 %v21, %v20
    %v27 = vpack.c.bf16 %v23, %v22
    %v28 = vld [vmem:[%s1] sm:$0x1f]
    %v29 = vld [vmem:[%s2] sm:$0x1f]
    %v31 = vlaneseq
    %v32 = vshrl.u32 %v31, 7
    %v33 = vsub.s32 0, %v32
    %v34 = vrot.slane %v29, %v33
    %v35 = vlaneseq
    %v36 = vshrl.u32 %v35, 7
    %v37 = vsub.s32 1, %v36
    %v38 = vrot.slane %v29, %v37
    %v39 = vlaneseq
    %v40 = vshrl.u32 %v39, 7
    %v41 = vsub.s32 2, %v40
    %v42 = vrot.slane %v29, %v41
    %v43 = vlaneseq
    %v44 = vshrl.u32 %v43, 7
    %v45 = vsub.s32 3, %v44
    %v46 = vrot.slane %v29, %v45
    %v47 = vlaneseq
    %v48 = vshrl.u32 %v47, 7
    %v49 = vsub.s32 4, %v48
    %v50 = vrot.slane %v29, %v49
    %v57 = vcombine.high %v28, %v28
    %v59 = vunpack.c.l.s4 1966171168
    %v60 = vunpack.c.0.s8 %v59
    %v61 = vlaneseq
    %v62 = vshrl.u32 %v61, 7
    %v63 = vsub.s32 %v60, %v62
    %v64 = vrot.slane %v28, %v63
    %v66 = vunpack.c.l.s4 1966171168
    %v67 = vunpack.c.0.s8 %v66
    %v68 = vlaneseq
    %v69 = vshrl.u32 %v68, 7
    %v70 = vsub.s32 %v67, %v69
    %v71 = vrot.slane %v57, %v70
    %v72 = vcombine.high %v64, %v64
    %v74 = vunpack.c.l.s4 1966171168
    %v75 = vunpack.c.0.s8 %v74
    %v76 = vlaneseq
    %v77 = vshrl.u32 %v76, 7
    %v78 = vsub.s32 %v75, %v77
    %v79 = vrot.slane %v64, %v78
    %v81 = vunpack.c.l.s4 1966171168
    %v82 = vunpack.c.0.s8 %v81
    %v83 = vlaneseq
    %v84 = vshrl.u32 %v83, 7
    %v85 = vsub.s32 %v82, %v84
    %v86 = vrot.slane %v71, %v85
    %v88 = vunpack.c.l.s4 1966171168
    %v89 = vunpack.c.0.s8 %v88
    %v90 = vlaneseq
    %v91 = vshrl.u32 %v90, 7
    %v92 = vsub.s32 %v89, %v91
    %v93 = vrot.slane %v72, %v92
    %v94 = vcombine.high %v79, %v79
    %v95 = vcombine.high %v93, %v93
    %vm96 = vcmask 15360
    %v98 = vsel %vm96, %v24, 0
    %v101 = vsel %vm96, %v25, 0
    %v104 = vsel %vm96, %v26, 0
    %v107 = vsel %vm96, %v27, 0
    %vm109 = vcmask 1040384
    %v111 = vsel %vm109, %v79, 0
    %v114 = vsel %vm109, %v93, 0
    %v117 = vsel %vm109, %v94, 0
    %v120 = vsel %vm109, %v95, 0
    %v123 = vsel %vm109, %v86, 0
    %125 = vmatprep.subr.bf16.mxu0 0
    %126 = vmatpush1.bf16.msra.mxu0 0
    %127 = vmatprep.subr.bf16.mxu0 0
    %128 = vmatpush1.bf16.msra.mxu0 0
    %129 = vmatprep.subr.bf16.mxu0 0
    %130 = vmatpush1.bf16.msra.mxu0 0
    %131 = vmatprep.subr.bf16.mxu0 0
    %132 = vmatpush1.bf16.msra.mxu0 0
    %133 = vmatprep.subr.bf16.mxu0 0
    %134 = vmatpush1.bf16.msra.mxu0 0
    %135 = vmatprep.subr.bf16.mxu0 0
    %136 = vmatpush1.bf16.msra.mxu0 0
    %137 = vmatprep.subr.bf16.mxu0 0
    %138 = vmatpush1.bf16.msra.mxu0 0
    %139 = vmatprep.subr.bf16.mxu0 %v114
    %140 = vmatpush1.bf16.msra.mxu0 %v111
    %141 = vmatprep.subr.bf16.mxu0 0
    %142 = vmatpush2.bf16.msra.mxu0 0
    %143 = vmatprep.subr.bf16.mxu0 0
    %144 = vmatpush2.bf16.msra.mxu0 0
    %145 = vmatprep.subr.bf16.mxu0 0
    %146 = vmatpush2.bf16.msra.mxu0 0
    %147 = vmatprep.subr.bf16.mxu0 0
    %148 = vmatpush2.bf16.msra.mxu0 0
    %149 = vmatprep.subr.bf16.mxu0 0
    %150 = vmatpush2.bf16.msra.mxu0 0
    %151 = vmatprep.subr.bf16.mxu0 0
    %152 = vmatpush2.bf16.msra.mxu0 0
    %153 = vmatprep.subr.bf16.mxu0 0
    %154 = vmatpush2.bf16.msra.mxu0 0
    %155 = vmatprep.subr.bf16.mxu0 0
    %156 = vmatpush2.bf16.msra.mxu0 0
    %157 = vmatprep.mubr.bf16.mxu0 0
    %158 = vmatmul.mubr.bf16.gmra.mxu0 %v98
    %v159 = vpop.f32.mrf.mxu0
    %v160 = vadd.f32 %v34, %v159
    %v161 = vpop.f32.mrf.mxu0
    %v162 = vadd.f32 %v38, %v161
    %v163 = vpop.f32.mrf.mxu0
    %v164 = vadd.f32 %v34, %v163
    %v165 = vpop.f32.mrf.mxu0
    %v166 = vadd.f32 %v38, %v165
    %167 = vmatprep.mubr.bf16.mxu0 0
    %168 = vmatmul.mubr.bf16.gmra.mxu0 %v101
    %v169 = vpop.f32.mrf.mxu0
    %v170 = vadd.f32 %v34, %v169
    %v171 = vpop.f32.mrf.mxu0
    %v172 = vadd.f32 %v38, %v171
    %v173 = vpop.f32.mrf.mxu0
    %v174 = vadd.f32 %v34, %v173
    %v175 = vpop.f32.mrf.mxu0
    %v176 = vadd.f32 %v38, %v175
    %177 = vmatprep.mubr.bf16.mxu0 0
    %178 = vmatmul.mubr.bf16.gmra.mxu0 %v104
    %v179 = vpop.f32.mrf.mxu0
    %v180 = vadd.f32 %v34, %v179
    %v181 = vpop.f32.mrf.mxu0
    %v182 = vadd.f32 %v38, %v181
    %v183 = vpop.f32.mrf.mxu0
    %v184 = vadd.f32 %v34, %v183
    %v185 = vpop.f32.mrf.mxu0
    %v186 = vadd.f32 %v38, %v185
    %187 = vmatprep.mubr.bf16.mxu0 0
    %188 = vmatmul.mubr.bf16.gmra.mxu0 %v107
    %v189 = vpop.f32.mrf.mxu0
    %v190 = vadd.f32 %v34, %v189
    %v191 = vpop.f32.mrf.mxu0
    %v192 = vadd.f32 %v38, %v191
    %v193 = vpop.f32.mrf.mxu0
    %v194 = vadd.f32 %v34, %v193
    %v195 = vpop.f32.mrf.mxu0
    %v196 = vadd.f32 %v38, %v195
    %197 = vdwg.mxu0
    %198 = vmatprep.subr.bf16.mxu0 0
    %199 = vmatpush1.bf16.msra.mxu0 0
    %200 = vmatprep.subr.bf16.mxu0 0
    %201 = vmatpush1.bf16.msra.mxu0 0
    %202 = vmatprep.subr.bf16.mxu0 0
    %203 = vmatpush1.bf16.msra.mxu0 0
    %204 = vmatprep.subr.bf16.mxu0 0
    %205 = vmatpush1.bf16.msra.mxu0 0
    %206 = vmatprep.subr.bf16.mxu0 0
    %207 = vmatpush1.bf16.msra.mxu0 0
    %208 = vmatprep.subr.bf16.mxu0 0
    %209 = vmatpush1.bf16.msra.mxu0 0
    %210 = vmatprep.subr.bf16.mxu0 0
    %211 = vmatpush1.bf16.msra.mxu0 0
    %212 = vmatprep.subr.bf16.mxu0 %v120
    %213 = vmatpush1.bf16.msra.mxu0 %v117
    %214 = vmatprep.subr.bf16.mxu0 0
    %215 = vmatpush2.bf16.msra.mxu0 0
    %216 = vmatprep.subr.bf16.mxu0 0
    %217 = vmatpush2.bf16.msra.mxu0 0
    %218 = vmatprep.subr.bf16.mxu0 0
    %219 = vmatpush2.bf16.msra.mxu0 0
    %220 = vmatprep.subr.bf16.mxu0 0
    %221 = vmatpush2.bf16.msra.mxu0 0
    %222 = vmatprep.subr.bf16.mxu0 0
    %223 = vmatpush2.bf16.msra.mxu0 0
    %224 = vmatprep.subr.bf16.mxu0 0
    %225 = vmatpush2.bf16.msra.mxu0 0
    %226 = vmatprep.subr.bf16.mxu0 0
    %227 = vmatpush2.bf16.msra.mxu0 0
    %228 = vmatprep.subr.bf16.mxu0 0
    %229 = vmatpush2.bf16.msra.mxu0 0
    %230 = vmatprep.mubr.bf16.mxu0 0
    %231 = vmatmul.mubr.bf16.gmra.mxu0 %v98
    %v232 = vpop.f32.mrf.mxu0
    %v233 = vadd.f32 %v42, %v232
    %v234 = vpop.f32.mrf.mxu0
    %v235 = vadd.f32 %v46, %v234
    %v236 = vpop.f32.mrf.mxu0
    %v237 = vadd.f32 %v42, %v236
    %v238 = vpop.f32.mrf.mxu0
    %v239 = vadd.f32 %v46, %v238
    %240 = vmatprep.mubr.bf16.mxu0 0
    %241 = vmatmul.mubr.bf16.gmra.mxu0 %v101
    %v242 = vpop.f32.mrf.mxu0
    %v243 = vadd.f32 %v42, %v242
    %v244 = vpop.f32.mrf.mxu0
    %v245 = vadd.f32 %v46, %v244
    %v246 = vpop.f32.mrf.mxu0
    %v247 = vadd.f32 %v42, %v246
    %v248 = vpop.f32.mrf.mxu0
    %v249 = vadd.f32 %v46, %v248
    %250 = vmatprep.mubr.bf16.mxu0 0
    %251 = vmatmul.mubr.bf16.gmra.mxu0 %v104
    %v252 = vpop.f32.mrf.mxu0
    %v253 = vadd.f32 %v42, %v252
    %v254 = vpop.f32.mrf.mxu0
    %v255 = vadd.f32 %v46, %v254
    %v256 = vpop.f32.mrf.mxu0
    %v257 = vadd.f32 %v42, %v256
    %v258 = vpop.f32.mrf.mxu0
    %v259 = vadd.f32 %v46, %v258
    %260 = vmatprep.mubr.bf16.mxu0 0
    %261 = vmatmul.mubr.bf16.gmra.mxu0 %v107
    %v262 = vpop.f32.mrf.mxu0
    %v263 = vadd.f32 %v42, %v262
    %v264 = vpop.f32.mrf.mxu0
    %v265 = vadd.f32 %v46, %v264
    %v266 = vpop.f32.mrf.mxu0
    %v267 = vadd.f32 %v42, %v266
    %v268 = vpop.f32.mrf.mxu0
    %v269 = vadd.f32 %v46, %v268
    %270 = vdwg.mxu0
    %271 = vmatprep.subr.bf16.mxu0 0
    %272 = vmatpush1.bf16.msra.mxu0 0
    %273 = vmatprep.subr.bf16.mxu0 0
    %274 = vmatpush1.bf16.msra.mxu0 0
    %275 = vmatprep.subr.bf16.mxu0 0
    %276 = vmatpush1.bf16.msra.mxu0 0
    %277 = vmatprep.subr.bf16.mxu0 0
    %278 = vmatpush1.bf16.msra.mxu0 0
    %279 = vmatprep.subr.bf16.mxu0 0
    %280 = vmatpush1.bf16.msra.mxu0 0
    %281 = vmatprep.subr.bf16.mxu0 0
    %282 = vmatpush1.bf16.msra.mxu0 0
    %283 = vmatprep.subr.bf16.mxu0 0
    %284 = vmatpush1.bf16.msra.mxu0 0
    %285 = vmatprep.subr.bf16.mxu0 0
    %286 = vmatpush1.bf16.msra.mxu0 %v123
    %287 = vmatprep.subr.bf16.mxu0 0
    %288 = vmatpush2.bf16.msra.mxu0 0
    %289 = vmatprep.subr.bf16.mxu0 0
    %290 = vmatpush2.bf16.msra.mxu0 0
    %291 = vmatprep.subr.bf16.mxu0 0
    %292 = vmatpush2.bf16.msra.mxu0 0
    %293 = vmatprep.subr.bf16.mxu0 0
    %294 = vmatpush2.bf16.msra.mxu0 0
    %295 = vmatprep.subr.bf16.mxu0 0
    %296 = vmatpush2.bf16.msra.mxu0 0
    %297 = vmatprep.subr.bf16.mxu0 0
    %298 = vmatpush2.bf16.msra.mxu0 0
    %299 = vmatprep.subr.bf16.mxu0 0
    %300 = vmatpush2.bf16.msra.mxu0 0
    %301 = vmatprep.subr.bf16.mxu0 0
    %302 = vmatpush2.bf16.msra.mxu0 0
    %303 = vmatprep.mubr.bf16.mxu0 0
    %304 = vmatmul.mubr.bf16.gmra.mxu0 %v98
    %v305 = vpop.f32.mrf.mxu0
    %v306 = vadd.f32 %v50, %v305
    %v307 = vpop.f32.mrf.mxu0
    %v308 = vpop.f32.mrf.mxu0
    %v309 = vadd.f32 %v50, %v308
    %v310 = vpop.f32.mrf.mxu0
    %311 = vmatprep.mubr.bf16.mxu0 0
    %312 = vmatmul.mubr.bf16.gmra.mxu0 %v101
    %v313 = vpop.f32.mrf.mxu0
    %v314 = vadd.f32 %v50, %v313
    %v315 = vpop.f32.mrf.mxu0
    %v316 = vpop.f32.mrf.mxu0
    %v317 = vadd.f32 %v50, %v316
    %v318 = vpop.f32.mrf.mxu0
    %319 = vmatprep.mubr.bf16.mxu0 0
    %320 = vmatmul.mubr.bf16.gmra.mxu0 %v104
    %v321 = vpop.f32.mrf.mxu0
    %v322 = vadd.f32 %v50, %v321
    %v323 = vpop.f32.mrf.mxu0
    %v324 = vpop.f32.mrf.mxu0
    %v325 = vadd.f32 %v50, %v324
    %v326 = vpop.f32.mrf.mxu0
    %327 = vmatprep.mubr.bf16.mxu0 0
    %328 = vmatmul.mubr.bf16.gmra.mxu0 %v107
    %v329 = vpop.f32.mrf.mxu0
    %v330 = vadd.f32 %v50, %v329
    %v331 = vpop.f32.mrf.mxu0
    %v332 = vpop.f32.mrf.mxu0
    %v333 = vadd.f32 %v50, %v332
    %v334 = vpop.f32.mrf.mxu0
    %335 = vdwg.mxu0
    %v336 = vpack.c.bf16 %v164, %v160
    %v337 = vpack.c.bf16 %v166, %v162
    %v338 = vpack.c.bf16 %v237, %v233
    %v339 = vpack.c.bf16 %v239, %v235
    %v340 = vpack.c.bf16 %v309, %v306
    %v341 = vpack.c.bf16 %v174, %v170
    %v342 = vpack.c.bf16 %v176, %v172
    %v343 = vpack.c.bf16 %v247, %v243
    %v344 = vpack.c.bf16 %v249, %v245
    %v345 = vpack.c.bf16 %v317, %v314
    %v346 = vpack.c.bf16 %v184, %v180
    %v347 = vpack.c.bf16 %v186, %v182
    %v348 = vpack.c.bf16 %v257, %v253
    %v349 = vpack.c.bf16 %v259, %v255
    %v350 = vpack.c.bf16 %v325, %v322
    %v351 = vpack.c.bf16 %v194, %v190
    %v352 = vpack.c.bf16 %v196, %v192
    %v353 = vpack.c.bf16 %v267, %v263
    %v354 = vpack.c.bf16 %v269, %v265
    %v355 = vpack.c.bf16 %v333, %v330
    %v376 = vunpack.c.l.b16 %v336
    %v377 = vunpack.c.l.b16 %v337
    %v378 = vunpack.c.l.b16 %v338
    %v379 = vunpack.c.l.b16 %v339
    %v380 = vunpack.c.l.b16 %v340
    %v381 = vunpack.c.h.b16 %v336
    %v382 = vunpack.c.h.b16 %v337
    %v383 = vunpack.c.h.b16 %v338
    %v384 = vunpack.c.h.b16 %v339
    %v385 = vunpack.c.h.b16 %v340
    %v386 = vunpack.c.l.b16 %v341
    %v387 = vunpack.c.l.b16 %v342
    %v388 = vunpack.c.l.b16 %v343
    %v389 = vunpack.c.l.b16 %v344
    %v390 = vunpack.c.l.b16 %v345
    %v391 = vunpack.c.h.b16 %v341
    %v392 = vunpack.c.h.b16 %v342
    %v393 = vunpack.c.h.b16 %v343
    %v394 = vunpack.c.h.b16 %v344
    %v395 = vunpack.c.h.b16 %v345
    %v396 = vunpack.c.l.b16 %v346
    %v397 = vunpack.c.l.b16 %v347
    %v398 = vunpack.c.l.b16 %v348
    %v399 = vunpack.c.l.b16 %v349
    %v400 = vunpack.c.l.b16 %v350
    %v401 = vunpack.c.h.b16 %v346
    %v402 = vunpack.c.h.b16 %v347
    %v403 = vunpack.c.h.b16 %v348
    %v404 = vunpack.c.h.b16 %v349
    %v405 = vunpack.c.h.b16 %v350
    %v406 = vunpack.c.l.b16 %v351
    %v407 = vunpack.c.l.b16 %v352
    %v408 = vunpack.c.l.b16 %v353
    %v409 = vunpack.c.l.b16 %v354
    %v410 = vunpack.c.l.b16 %v355
    %v411 = vunpack.c.h.b16 %v351
    %v412 = vunpack.c.h.b16 %v352
    %v413 = vunpack.c.h.b16 %v353
    %v414 = vunpack.c.h.b16 %v354
    %v415 = vunpack.c.h.b16 %v355
    %v416 = vpack.c.b16 %v377, %v376
    %v417 = vpack.c.b16 %v379, %v378
    %v418 = vpack.c.b16 %v380, %v380
    %v419 = vpack.c.b16 %v382, %v381
    %v420 = vpack.c.b16 %v384, %v383
    %v421 = vpack.c.b16 %v385, %v385
    %v422 = vpack.c.b16 %v387, %v386
    %v423 = vpack.c.b16 %v389, %v388
    %v424 = vpack.c.b16 %v390, %v390
    %v425 = vpack.c.b16 %v392, %v391
    %v426 = vpack.c.b16 %v394, %v393
    %v427 = vpack.c.b16 %v395, %v395
    %v428 = vpack.c.b16 %v397, %v396
    %v429 = vpack.c.b16 %v399, %v398
    %v430 = vpack.c.b16 %v400, %v400
    %v431 = vpack.c.b16 %v402, %v401
    %v432 = vpack.c.b16 %v404, %v403
    %v433 = vpack.c.b16 %v405, %v405
    %v434 = vpack.c.b16 %v407, %v406
    %v435 = vpack.c.b16 %v409, %v408
    %v436 = vpack.c.b16 %v410, %v410
    %v437 = vpack.c.b16 %v412, %v411
    %v438 = vpack.c.b16 %v414, %v413
    %v439 = vpack.c.b16 %v415, %v415
    %464 = vst [vmem:[#allocation2] sm:$0xff] %v416
    %465 = vst [vmem:[#allocation2 + $0x8] sm:$0xff] %v417
    %466 = vst [vmem:[#allocation2 + $0x10] sm:$0xf] %v418
    %467 = vst [vmem:[#allocation2 + $0x14] sm:$0xff] %v419
    %468 = vst [vmem:[#allocation2 + $0x1c] sm:$0xff] %v420
    %469 = vst [vmem:[#allocation2 + $0x24] sm:$0xf] %v421
    %470 = vst [vmem:[#allocation2 + $0x28] sm:$0xff] %v422
    %471 = vst [vmem:[#allocation2 + $0x30] sm:$0xff] %v423
    %472 = vst [vmem:[#allocation2 + $0x38] sm:$0xf] %v424
    %473 = vst [vmem:[#allocation2 + $0x3c] sm:$0xff] %v425
    %474 = vst [vmem:[#allocation2 + $0x44] sm:$0xff] %v426
    %475 = vst [vmem:[#allocation2 + $0x4c] sm:$0xf] %v427
    %476 = vst [vmem:[#allocation2 + $0x50] sm:$0xff] %v428
    %477 = vst [vmem:[#allocation2 + $0x58] sm:$0xff] %v429
    %478 = vst [vmem:[#allocation2 + $0x60] sm:$0xf] %v430
    %479 = vst [vmem:[#allocation2 + $0x64] sm:$0xff] %v431
    %480 = vst [vmem:[#allocation2 + $0x6c] sm:$0xff] %v432
    %481 = vst [vmem:[#allocation2 + $0x74] sm:$0xf] %v433
    %482 = vst [vmem:[#allocation2 + $0x78] sm:$0xff] %v434
    %483 = vst [vmem:[#allocation2 + $0x80] sm:$0xff] %v435
    %484 = vst [vmem:[#allocation2 + $0x88] sm:$0xf] %v436
    %485 = vst [vmem:[#allocation2 + $0x8c] sm:$0xff] %v437
    %486 = vst [vmem:[#allocation2 + $0x94] sm:$0xff] %v438
    %487 = vst [vmem:[#allocation2 + $0x9c] sm:$0xf] %v439
    // Predicated region
    $region14: #{tpu_custom_call.1} parent=1 // pred_check
      _
    $region15: #{tpu_custom_call.1} parent=1 // pred_check_branch
      %489 = sbr.rel (0) target = $region17
    $region16: #{tpu_custom_call.1} parent=1 // pred_region
      %s491 = ssub.s32 2560, 2560
      %492 = vsyncadd [#allocation3], %s491
      %s493 = sshll.u32 [#allocation2], 4
      %s494 = int_to_ptr.vmem [resolvable:$true] %s493
      %499 = dma.vmem_to_hbm [thread:$0]  %s494, 2560, %s3, [#allocation3], 320, 320, 20
    $region17: #{tpu_custom_call.1} parent=1 // pred_fallthru
      _
    // Predicated region
    $region18: #{tpu_custom_call.1} parent=1 // pred_check
      _
    $region19: #{tpu_custom_call.1} parent=1 // pred_check_branch
      %501 = sbr.rel (0) target = $region21
    $region20: #{tpu_custom_call.1} parent=1 // pred_region
      %502 = dma.done [#allocation3], 2560
    $region21: #{tpu_custom_call.1} parent=1 // pred_fallthru
      _
    %503 = vsyncpa [#allocation3], 1

</llo_original>
